<compile_context>
chip_gen: v6e
topology: v6e:2x2x1
jax: 0.10.0
libtpu: 0.0.40
codegen_flags: <defaults>
</compile_context>

<pallas_src>
import functools

import jax
import jax.numpy as jnp
from jax.experimental import pallas as pl
from jax.experimental.pallas import tpu as pltpu

_LANE = 128     # TPU lane width / MXU-friendly feature multiple
_SUBLANE = 8    # TPU sublane tile


def _abstract_policy_kernel(s_ref,
                            we1_ref, be1_ref, we2_ref, be2_ref,
                            wp1_ref, bp1_ref, wp2_ref, bp2_ref,
                            out_ref):
    """Fused encoder + policy MLP forward for one (lane-dense) batch tile.

    Matmul operands are bf16 (MXU fast path), accumulation and all elementwise
    work (bias add, ReLU) stay in f32.
    """
    x = s_ref[...]                                                   # [TB, obs_p] bf16

    # encoder
    h = jnp.dot(x, we1_ref[...], preferred_element_type=jnp.float32) + be1_ref[...]
    h = jnp.maximum(h, 0.0)                                          # ReLU (f32 VPU)
    z = jnp.dot(h.astype(jnp.bfloat16), we2_ref[...],
                preferred_element_type=jnp.float32) + be2_ref[...]

    # policy
    g = jnp.dot(z.astype(jnp.bfloat16), wp1_ref[...],
                preferred_element_type=jnp.float32) + bp1_ref[...]
    g = jnp.maximum(g, 0.0)                                          # ReLU (f32 VPU)
    logits = jnp.dot(g.astype(jnp.bfloat16), wp2_ref[...],
                     preferred_element_type=jnp.float32) + bp2_ref[...]

    out_ref[...] = logits.astype(out_ref.dtype)                      # [TB, act_p] f32


def _pad2d(x, row_mult=None, col_mult=None):
    """Zero-pad a 2-D array so each dim is a multiple of the given value."""
    pr = 0 if row_mult is None else (-x.shape[0]) % row_mult
    pc = 0 if col_mult is None else (-x.shape[1]) % col_mult
    if pr == 0 and pc == 0:
        return x
    return jnp.pad(x, ((0, pr), (0, pc)))


def _round_up(n, m):
    return ((n + m - 1) // m) * m


@functools.partial(jax.jit, static_argnames=("batch_tile",))
def _forward_impl(s, params, *, batch_tile):
    we1, be1, we2, be2, wp1, bp1, wp2, bp2 = params
    B, _ = s.shape
    n_actions = wp2.shape[1]

    # ---- one-time layout plumbing: pad to (batch_tile, 128) multiples, bf16 weights ----
    s_p = _pad2d(s, row_mult=batch_tile, col_mult=_LANE).astype(jnp.bfloat16)
    Bp, obs_p = s_p.shape

    def prep_linear(w, b):
        w_p = _pad2d(w, row_mult=_LANE, col_mult=_LANE).astype(jnp.bfloat16)  # MXU operand
        b_p = _pad2d(b, col_mult=_LANE).astype(jnp.float32)                   # f32 elementwise
        return w_p, b_p

    we1_p, be1_p = prep_linear(we1, be1)
    we2_p, be2_p = prep_linear(we2, be2)
    wp1_p, bp1_p = prep_linear(wp1, bp1)
    wp2_p, bp2_p = prep_linear(wp2, bp2)
    act_p = wp2_p.shape[1]

    # Small constant weights/biases: constant block index -> resident in VMEM
    # across all batch-tile steps (no re-DMA).
    def _full(shape):
        return pl.BlockSpec(shape, lambda i: (0,) * len(shape))

    grid = (Bp // batch_tile,)
    out_p = pl.pallas_call(
        _abstract_policy_kernel,
        out_shape=jax.ShapeDtypeStruct((Bp, act_p), jnp.float32),
        grid_spec=pl.GridSpec(
            grid=grid,
            in_specs=[
                pl.BlockSpec((batch_tile, obs_p), lambda i: (i, 0)),  # s batch tile
                _full(we1_p.shape), _full(be1_p.shape),
                _full(we2_p.shape), _full(be2_p.shape),
                _full(wp1_p.shape), _full(bp1_p.shape),
                _full(wp2_p.shape), _full(bp2_p.shape),
            ],
            out_specs=pl.BlockSpec((batch_tile, act_p), lambda i: (i, 0)),  # lane-dense
        ),
        compiler_params=pltpu.CompilerParams(
            dimension_semantics=("parallel",)),
    )(s_p, we1_p, be1_p, we2_p, be2_p, wp1_p, bp1_p, wp2_p, bp2_p)

    return out_p[:B, :n_actions]


def abstract_policy_forward(s, params, *, batch_tile=None):
    """policy(encoder(s)) — JAX wrapper around the fused Pallas kernel.

    Zero-pads batch/feature dims to MXU-friendly multiples (semantics preserved:
    padded weight rows/cols and bias entries are zero, ReLU(0)=0), runs the fused
    kernel, then slices the real [:B, :n_actions] logits back out.
    """
    B = s.shape[0]
    if batch_tile is None:
        # Adaptive: tiny batches don't pay for 128 padded rows; large batches
        # keep a 128-row tile (>= 2 parallel grid steps -> both v7x TCs busy).
        batch_tile = min(_LANE, _round_up(B, _SUBLANE))
    assert batch_tile % _SUBLANE == 0, "batch_tile must be a multiple of the 8-sublane tile"
    return _forward_impl(s, tuple(params), batch_tile=batch_tile)


def init_params(key, obs_dim, enc_hidden, latent, pol_hidden, n_actions):
    """Deterministic synthetic parameters (Kaiming-ish scaling), stored in f32."""
    ks = jax.random.split(key, 8)

    def lin(kw, kb, fan_in, fan_out):
        w = jax.random.normal(kw, (fan_in, fan_out), jnp.float32) / jnp.sqrt(fan_in)
        b = 0.01 * jax.random.normal(kb, (1, fan_out), jnp.float32)
        return w, b

    we1, be1 = lin(ks[0], ks[1], obs_dim, enc_hidden)
    we2, be2 = lin(ks[2], ks[3], enc_hidden, latent)
    wp1, bp1 = lin(ks[4], ks[5], latent, pol_hidden)
    wp2, bp2 = lin(ks[6], ks[7], pol_hidden, n_actions)
    return (we1, be1, we2, be2, wp1, bp1, wp2, bp2)


def _reference_forward(s, params):
    """Pure-JAX reference with the same mixed-precision policy (bf16 dot, f32 acc)."""
    we1, be1, we2, be2, wp1, bp1, wp2, bp2 = params

    def dot_bf16(a, w):
        return jnp.dot(a.astype(jnp.bfloat16), w.astype(jnp.bfloat16),
                       preferred_element_type=jnp.float32)

    h = jnp.maximum(dot_bf16(s, we1) + be1, 0.0)
    z = dot_bf16(h, we2) + be2
    g = jnp.maximum(dot_bf16(z, wp1) + bp1, 0.0)
    return dot_bf16(g, wp2) + bp2


def _reference_forward_f32(s, params):
    """Full-f32 reference (loose tolerance check on mixed-precision error)."""
    we1, be1, we2, be2, wp1, bp1, wp2, bp2 = params
    h = jnp.maximum(s @ we1 + be1, 0.0)
    z = h @ we2 + be2
    g = jnp.maximum(z @ wp1 + bp1, 0.0)
    return g @ wp2 + bp2


if __name__ == "__main__":
    # Small shapes consistent with an MLP encoder/policy wrapper.
    B, OBS, ENC_H, LATENT, POL_H, ACT = 16, 32, 64, 32, 64, 8

    key = jax.random.PRNGKey(0)
    k_s, k_p = jax.random.split(key)
    s = jax.random.normal(k_s, (B, OBS), jnp.float32)
    params = init_params(k_p, OBS, ENC_H, LATENT, POL_H, ACT)

    out = abstract_policy_forward(s, params)
    out = jax.block_until_ready(out)

    assert out.shape == (B, ACT)
    ref_mixed = _reference_forward(s, params)
    assert jnp.allclose(out, ref_mixed, atol=2e-3, rtol=2e-3), "mismatch vs mixed-precision ref"
    ref_f32 = _reference_forward_f32(s, params)
    assert jnp.allclose(out, ref_f32, atol=5e-2, rtol=5e-2), "mismatch vs f32 ref"

    print("KERNEL_OK")
</pallas_src>

<mosaic_0001>
module attributes {stable_mosaic.version = 11 : i64} {
  func.func @_abstract_policy_kernel(%arg0: i32, %arg1: memref<16x128xbf16, #tpu.memory_space<vmem>>, %arg2: memref<128x128xbf16, #tpu.memory_space<vmem>>, %arg3: memref<1x128xf32, #tpu.memory_space<vmem>>, %arg4: memref<128x128xbf16, #tpu.memory_space<vmem>>, %arg5: memref<1x128xf32, #tpu.memory_space<vmem>>, %arg6: memref<128x128xbf16, #tpu.memory_space<vmem>>, %arg7: memref<1x128xf32, #tpu.memory_space<vmem>>, %arg8: memref<128x128xbf16, #tpu.memory_space<vmem>>, %arg9: memref<1x128xf32, #tpu.memory_space<vmem>>, %arg10: memref<16x128xf32, #tpu.memory_space<vmem>>) attributes {dimension_semantics = [#tpu.dimension_semantics<parallel>], iteration_bounds = array<i64: 1>, scalar_prefetch = 0 : i64, scratch_operands = 0 : i64, tpu.core_type = #tpu.core_type<tc>, window_params = [{transform_indices = @transform_0, window_bounds = array<i64: 16, 128>}, {pipeline_mode = #tpu.pipeline_mode<synchronous>, transform_indices = @transform_1, window_bounds = array<i64: 128, 128>}, {pipeline_mode = #tpu.pipeline_mode<synchronous>, transform_indices = @transform_2, window_bounds = array<i64: 1, 128>}, {pipeline_mode = #tpu.pipeline_mode<synchronous>, transform_indices = @transform_3, window_bounds = array<i64: 128, 128>}, {pipeline_mode = #tpu.pipeline_mode<synchronous>, transform_indices = @transform_4, window_bounds = array<i64: 1, 128>}, {pipeline_mode = #tpu.pipeline_mode<synchronous>, transform_indices = @transform_5, window_bounds = array<i64: 128, 128>}, {pipeline_mode = #tpu.pipeline_mode<synchronous>, transform_indices = @transform_6, window_bounds = array<i64: 1, 128>}, {pipeline_mode = #tpu.pipeline_mode<synchronous>, transform_indices = @transform_7, window_bounds = array<i64: 128, 128>}, {pipeline_mode = #tpu.pipeline_mode<synchronous>, transform_indices = @transform_8, window_bounds = array<i64: 1, 128>}, {transform_indices = @transform_9, window_bounds = array<i64: 16, 128>}]} {
    %c0 = arith.constant 0 : index
    %c0_0 = arith.constant 0 : index
    %0 = vector.load %arg1[%c0, %c0_0] : memref<16x128xbf16, #tpu.memory_space<vmem>>, vector<16x128xbf16>
    %c0_1 = arith.constant 0 : index
    %c0_2 = arith.constant 0 : index
    %1 = vector.load %arg2[%c0_1, %c0_2] : memref<128x128xbf16, #tpu.memory_space<vmem>>, vector<128x128xbf16>
    %cst = arith.constant dense<0.000000e+00> : vector<16x128xf32>
    %2 = tpu.matmul %0, %1, %cst {dimension_numbers = #tpu.dot_dimension_numbers<[1], [0], [0], [1], [0, 0, 1, 1], [], []>} : vector<16x128xbf16>, vector<128x128xbf16>, vector<16x128xf32> -> vector<16x128xf32>
    %c0_3 = arith.constant 0 : index
    %c0_4 = arith.constant 0 : index
    %3 = vector.load %arg3[%c0_3, %c0_4] : memref<1x128xf32, #tpu.memory_space<vmem>>, vector<1x128xf32>
    %4 = vector.broadcast %3 : vector<1x128xf32> to vector<16x128xf32>
    %5 = arith.addf %2, %4 : vector<16x128xf32>
    %cst_5 = arith.constant 0.000000e+00 : f32
    %6 = vector.broadcast %cst_5 : f32 to vector<16x128xf32>
    %7 = arith.maximumf %5, %6 : vector<16x128xf32>
    %8 = arith.truncf %7 : vector<16x128xf32> to vector<16x128xbf16>
    %c0_6 = arith.constant 0 : index
    %c0_7 = arith.constant 0 : index
    %9 = vector.load %arg4[%c0_6, %c0_7] : memref<128x128xbf16, #tpu.memory_space<vmem>>, vector<128x128xbf16>
    %cst_8 = arith.constant dense<0.000000e+00> : vector<16x128xf32>
    %10 = tpu.matmul %8, %9, %cst_8 {dimension_numbers = #tpu.dot_dimension_numbers<[1], [0], [0], [1], [0, 0, 1, 1], [], []>} : vector<16x128xbf16>, vector<128x128xbf16>, vector<16x128xf32> -> vector<16x128xf32>
    %c0_9 = arith.constant 0 : index
    %c0_10 = arith.constant 0 : index
    %11 = vector.load %arg5[%c0_9, %c0_10] : memref<1x128xf32, #tpu.memory_space<vmem>>, vector<1x128xf32>
    %12 = vector.broadcast %11 : vector<1x128xf32> to vector<16x128xf32>
    %13 = arith.addf %10, %12 : vector<16x128xf32>
    %14 = arith.truncf %13 : vector<16x128xf32> to vector<16x128xbf16>
    %c0_11 = arith.constant 0 : index
    %c0_12 = arith.constant 0 : index
    %15 = vector.load %arg6[%c0_11, %c0_12] : memref<128x128xbf16, #tpu.memory_space<vmem>>, vector<128x128xbf16>
    %cst_13 = arith.constant dense<0.000000e+00> : vector<16x128xf32>
    %16 = tpu.matmul %14, %15, %cst_13 {dimension_numbers = #tpu.dot_dimension_numbers<[1], [0], [0], [1], [0, 0, 1, 1], [], []>} : vector<16x128xbf16>, vector<128x128xbf16>, vector<16x128xf32> -> vector<16x128xf32>
    %c0_14 = arith.constant 0 : index
    %c0_15 = arith.constant 0 : index
    %17 = vector.load %arg7[%c0_14, %c0_15] : memref<1x128xf32, #tpu.memory_space<vmem>>, vector<1x128xf32>
    %18 = vector.broadcast %17 : vector<1x128xf32> to vector<16x128xf32>
    %19 = arith.addf %16, %18 : vector<16x128xf32>
    %cst_16 = arith.constant 0.000000e+00 : f32
    %20 = vector.broadcast %cst_16 : f32 to vector<16x128xf32>
    %21 = arith.maximumf %19, %20 : vector<16x128xf32>
    %22 = arith.truncf %21 : vector<16x128xf32> to vector<16x128xbf16>
    %c0_17 = arith.constant 0 : index
    %c0_18 = arith.constant 0 : index
    %23 = vector.load %arg8[%c0_17, %c0_18] : memref<128x128xbf16, #tpu.memory_space<vmem>>, vector<128x128xbf16>
    %cst_19 = arith.constant dense<0.000000e+00> : vector<16x128xf32>
    %24 = tpu.matmul %22, %23, %cst_19 {dimension_numbers = #tpu.dot_dimension_numbers<[1], [0], [0], [1], [0, 0, 1, 1], [], []>} : vector<16x128xbf16>, vector<128x128xbf16>, vector<16x128xf32> -> vector<16x128xf32>
    %c0_20 = arith.constant 0 : index
    %c0_21 = arith.constant 0 : index
    %25 = vector.load %arg9[%c0_20, %c0_21] : memref<1x128xf32, #tpu.memory_space<vmem>>, vector<1x128xf32>
    %26 = vector.broadcast %25 : vector<1x128xf32> to vector<16x128xf32>
    %27 = arith.addf %24, %26 : vector<16x128xf32>
    %c0_22 = arith.constant 0 : index
    %c0_23 = arith.constant 0 : index
    %28 = vector.load %arg10[%c0_22, %c0_23] : memref<16x128xf32, #tpu.memory_space<vmem>>, vector<16x128xf32>
    tpu.vector_store %arg10[%c0_22, %c0_23], %27 {strides = array<i32>} : memref<16x128xf32, #tpu.memory_space<vmem>>, vector<16x128xf32>,
    return
  }
  func.func @transform_0(%arg0: i32) -> (i32, i32) {
    %c0_i32 = arith.constant 0 : i32
    %c0_i32_0 = arith.constant 0 : i32
    return %arg0, %c0_i32 : i32, i32
  }
  func.func @transform_1(%arg0: i32) -> (i32, i32) {
    %c0_i32 = arith.constant 0 : i32
    %c0_i32_0 = arith.constant 0 : i32
    %c0_i32_1 = arith.constant 0 : i32
    return %c0_i32, %c0_i32_0 : i32, i32
  }
  func.func @transform_2(%arg0: i32) -> (i32, i32) {
    %c0_i32 = arith.constant 0 : i32
    %c0_i32_0 = arith.constant 0 : i32
    %c0_i32_1 = arith.constant 0 : i32
    return %c0_i32, %c0_i32_0 : i32, i32
  }
  func.func @transform_3(%arg0: i32) -> (i32, i32) {
    %c0_i32 = arith.constant 0 : i32
    %c0_i32_0 = arith.constant 0 : i32
    %c0_i32_1 = arith.constant 0 : i32
    return %c0_i32, %c0_i32_0 : i32, i32
  }
  func.func @transform_4(%arg0: i32) -> (i32, i32) {
    %c0_i32 = arith.constant 0 : i32
    %c0_i32_0 = arith.constant 0 : i32
    %c0_i32_1 = arith.constant 0 : i32
    return %c0_i32, %c0_i32_0 : i32, i32
  }
  func.func @transform_5(%arg0: i32) -> (i32, i32) {
    %c0_i32 = arith.constant 0 : i32
    %c0_i32_0 = arith.constant 0 : i32
    %c0_i32_1 = arith.constant 0 : i32
    return %c0_i32, %c0_i32_0 : i32, i32
  }
  func.func @transform_6(%arg0: i32) -> (i32, i32) {
    %c0_i32 = arith.constant 0 : i32
    %c0_i32_0 = arith.constant 0 : i32
    %c0_i32_1 = arith.constant 0 : i32
    return %c0_i32, %c0_i32_0 : i32, i32
  }
  func.func @transform_7(%arg0: i32) -> (i32, i32) {
    %c0_i32 = arith.constant 0 : i32
    %c0_i32_0 = arith.constant 0 : i32
    %c0_i32_1 = arith.constant 0 : i32
    return %c0_i32, %c0_i32_0 : i32, i32
  }
  func.func @transform_8(%arg0: i32) -> (i32, i32) {
    %c0_i32 = arith.constant 0 : i32
    %c0_i32_0 = arith.constant 0 : i32
    %c0_i32_1 = arith.constant 0 : i32
    return %c0_i32, %c0_i32_0 : i32, i32
  }
  func.func @transform_9(%arg0: i32) -> (i32, i32) {
    %c0_i32 = arith.constant 0 : i32
    %c0_i32_0 = arith.constant 0 : i32
    return %arg0, %c0_i32 : i32, i32
  }
}

</mosaic_0001>

<llo_original>
// kernel: _forward_impl.1
$region0: #{_forward_impl.1}
  #allocation0 [shape = 'u32[]', space=smem, size = 0x4, offset = 0x4, fixed_abs, tag = 'smem constant byte address 0x4 - core index']
  #allocation1 [shape = 'u32[144,128]{1,0:T(1,128)}', space=vmem, size = 0x12000, scoped, tag = 'internal scratch']
  %s0 = inlined_call_operand.vmem [shape: bf16[16,128], index: 0, kind: input, shape index: {}]
  %s1 = inlined_call_operand.vmem [shape: bf16[128,128], index: 1, kind: input, shape index: {}]
  %s2 = inlined_call_operand.vmem [shape: f32[1,128], index: 2, kind: input, shape index: {}]
  %s3 = inlined_call_operand.vmem [shape: bf16[128,128], index: 3, kind: input, shape index: {}]
  %s4 = inlined_call_operand.vmem [shape: f32[1,128], index: 4, kind: input, shape index: {}]
  %s5 = inlined_call_operand.vmem [shape: bf16[128,128], index: 5, kind: input, shape index: {}]
  %s6 = inlined_call_operand.vmem [shape: f32[1,128], index: 6, kind: input, shape index: {}]
  %s7 = inlined_call_operand.vmem [shape: bf16[128,128], index: 7, kind: input, shape index: {}]
  %s8 = inlined_call_operand.vmem [shape: f32[1,128], index: 8, kind: input, shape index: {}]
  %s9 = inlined_call_operand.vmem [shape: f32[16,128], index: 9, kind: output, shape index: {}]
  %s10 = sld [smem:[#allocation0]]
  $region46: #{_forward_impl.1} parent=0
    _
  %s12 = ssub.s32 1, %s10
  %s13 = scalar_select 0, %s12, %s10
  // Predicated region
  $region2: #{_forward_impl.1} parent=0 // pred_check
    _
  $region3: #{_forward_impl.1} parent=0 // pred_check_branch
    %15 = sbr.rel (0) target = $region5
  $region4: #{_forward_impl.1} parent=0 // pred_region
    _
  $region5: #{_forward_impl.1} parent=0 // pred_fallthru
    _
  // Predicated region
  $region6: #{_forward_impl.1} parent=0 // pred_check
    _
  $region7: #{_forward_impl.1} parent=0 // pred_check_branch
    %17 = sbr.rel (0) target = $region9
  $region8: #{_forward_impl.1} parent=0 // pred_region
    _
  $region9: #{_forward_impl.1} parent=0 // pred_fallthru
    _
  // Predicated region
  $region10: #{_forward_impl.1} parent=0 // pred_check
    _
  $region11: #{_forward_impl.1} parent=0 // pred_check_branch
    %19 = sbr.rel (0) target = $region13
  $region12: #{_forward_impl.1} parent=0 // pred_region
    _
  $region13: #{_forward_impl.1} parent=0 // pred_fallthru
    _
  // Predicated region
  $region14: #{_forward_impl.1} parent=0 // pred_check
    _
  $region15: #{_forward_impl.1} parent=0 // pred_check_branch
    %21 = sbr.rel (0) target = $region17
  $region16: #{_forward_impl.1} parent=0 // pred_region
    _
  $region17: #{_forward_impl.1} parent=0 // pred_fallthru
    _
  // Predicated region
  $region18: #{_forward_impl.1} parent=0 // pred_check
    _
  $region19: #{_forward_impl.1} parent=0 // pred_check_branch
    %23 = sbr.rel (0) target = $region21
  $region20: #{_forward_impl.1} parent=0 // pred_region
    _
  $region21: #{_forward_impl.1} parent=0 // pred_fallthru
    _
  // Predicated region
  $region22: #{_forward_impl.1} parent=0 // pred_check
    _
  $region23: #{_forward_impl.1} parent=0 // pred_check_branch
    %25 = sbr.rel (0) target = $region25
  $region24: #{_forward_impl.1} parent=0 // pred_region
    _
  $region25: #{_forward_impl.1} parent=0 // pred_fallthru
    _
  // Predicated region
  $region26: #{_forward_impl.1} parent=0 // pred_check
    _
  $region27: #{_forward_impl.1} parent=0 // pred_check_branch
    %27 = sbr.rel (0) target = $region29
  $region28: #{_forward_impl.1} parent=0 // pred_region
    _
  $region29: #{_forward_impl.1} parent=0 // pred_fallthru
    _
  // Predicated region
  $region30: #{_forward_impl.1} parent=0 // pred_check
    _
  $region31: #{_forward_impl.1} parent=0 // pred_check_branch
    %29 = sbr.rel (0) target = $region33
  $region32: #{_forward_impl.1} parent=0 // pred_region
    _
  $region33: #{_forward_impl.1} parent=0 // pred_fallthru
    _
  // Predicated region
  $region34: #{_forward_impl.1} parent=0 // pred_check
    _
  $region35: #{_forward_impl.1} parent=0 // pred_check_branch
    %31 = sbr.rel (0) target = $region37
  $region36: #{_forward_impl.1} parent=0 // pred_region
    _
  $region37: #{_forward_impl.1} parent=0 // pred_fallthru
    _
  %v33 = vld [vmem:[%s0] sm:$0xf]
  %v34 = vld [vmem:[%s0 + $0x4] sm:$0xf]
  %v35 = vld [vmem:[%s1] sm:$0xf]
  %v36 = vld [vmem:[%s1 + $0x4] sm:$0xf]
  %v37 = vld [vmem:[%s1 + $0x8] sm:$0xf]
  %v38 = vld [vmem:[%s1 + $0xc] sm:$0xf]
  %v39 = vld [vmem:[%s1 + $0x10] sm:$0xf]
  %v40 = vld [vmem:[%s1 + $0x14] sm:$0xf]
  %v41 = vld [vmem:[%s1 + $0x18] sm:$0xf]
  %v42 = vld [vmem:[%s1 + $0x1c] sm:$0xf]
  %v43 = vld [vmem:[%s1 + $0x20] sm:$0xf]
  %v44 = vld [vmem:[%s1 + $0x24] sm:$0xf]
  %v45 = vld [vmem:[%s1 + $0x28] sm:$0xf]
  %v46 = vld [vmem:[%s1 + $0x2c] sm:$0xf]
  %v47 = vld [vmem:[%s1 + $0x30] sm:$0xf]
  %v48 = vld [vmem:[%s1 + $0x34] sm:$0xf]
  %v49 = vld [vmem:[%s1 + $0x38] sm:$0xf]
  %v50 = vld [vmem:[%s1 + $0x3c] sm:$0xf]
  %v51 = vld [vmem:[%s2] sm:$0x1]
  %v53 = vlaneseq
  %v54 = vshrl.u32 %v53, 7
  %v55 = vsub.s32 0, %v54
  %v56 = vrot.slane %v51, %v55
  %v60 = vunpack.c.l.b16 %v33
  %v61 = vunpack.c.l.b16 %v34
  %v62 = vpack.c.b16 %v61, %v60
  %v80 = vunpack.c.l.b16 %v35
  %v81 = vunpack.c.l.b16 %v36
  %v82 = vunpack.c.l.b16 %v37
  %v83 = vunpack.c.l.b16 %v38
  %v84 = vunpack.c.l.b16 %v39
  %v85 = vunpack.c.l.b16 %v40
  %v86 = vunpack.c.l.b16 %v41
  %v87 = vunpack.c.l.b16 %v42
  %v88 = vunpack.c.l.b16 %v43
  %v89 = vunpack.c.l.b16 %v44
  %v90 = vunpack.c.l.b16 %v45
  %v91 = vunpack.c.l.b16 %v46
  %v92 = vunpack.c.l.b16 %v47
  %v93 = vunpack.c.l.b16 %v48
  %v94 = vunpack.c.l.b16 %v49
  %v95 = vunpack.c.l.b16 %v50
  %v96 = vpack.c.b16 %v81, %v80
  %v97 = vpack.c.b16 %v83, %v82
  %v98 = vpack.c.b16 %v85, %v84
  %v99 = vpack.c.b16 %v87, %v86
  %v100 = vpack.c.b16 %v89, %v88
  %v101 = vpack.c.b16 %v91, %v90
  %v102 = vpack.c.b16 %v93, %v92
  %v103 = vpack.c.b16 %v95, %v94
  %112 = vmatprep.subr.bf16.mxu0 0
  %113 = vmatpush1.bf16.msra.mxu0 %v103
  %114 = vmatprep.subr.bf16.mxu0 0
  %115 = vmatpush1.bf16.msra.mxu0 %v102
  %116 = vmatprep.subr.bf16.mxu0 0
  %117 = vmatpush1.bf16.msra.mxu0 %v101
  %118 = vmatprep.subr.bf16.mxu0 0
  %119 = vmatpush1.bf16.msra.mxu0 %v100
  %120 = vmatprep.subr.bf16.mxu0 0
  %121 = vmatpush1.bf16.msra.mxu0 %v99
  %122 = vmatprep.subr.bf16.mxu0 0
  %123 = vmatpush1.bf16.msra.mxu0 %v98
  %124 = vmatprep.subr.bf16.mxu0 0
  %125 = vmatpush1.bf16.msra.mxu0 %v97
  %126 = vmatprep.subr.bf16.mxu0 0
  %127 = vmatpush1.bf16.msra.mxu0 %v96
  %128 = vmatprep.subr.bf16.mxu0 0
  %129 = vmatpush2.bf16.msra.mxu0 0
  %130 = vmatprep.subr.bf16.mxu0 0
  %131 = vmatpush2.bf16.msra.mxu0 0
  %132 = vmatprep.subr.bf16.mxu0 0
  %133 = vmatpush2.bf16.msra.mxu0 0
  %134 = vmatprep.subr.bf16.mxu0 0
  %135 = vmatpush2.bf16.msra.mxu0 0
  %136 = vmatprep.subr.bf16.mxu0 0
  %137 = vmatpush2.bf16.msra.mxu0 0
  %138 = vmatprep.subr.bf16.mxu0 0
  %139 = vmatpush2.bf16.msra.mxu0 0
  %140 = vmatprep.subr.bf16.mxu0 0
  %141 = vmatpush2.bf16.msra.mxu0 0
  %142 = vmatprep.subr.bf16.mxu0 0
  %143 = vmatpush2.bf16.msra.mxu0 0
  %144 = vmatprep.mubr.bf16.mxu0 0
  %145 = vmatmul.mubr.bf16.gmra.mxu0 %v62
  %v146 = vpop.f32.mrf.mxu0
  %v147 = vadd.f32 %v56, %v146
  %v148 = vpop.f32.mrf.mxu0
  %v149 = vpop.f32.mrf.mxu0
  %v150 = vadd.f32 %v56, %v149
  %v151 = vpop.f32.mrf.mxu0
  %152 = vdwg.mxu0
  %v153 = vmax.f32 %v147, 0.0
  %v154 = vmax.f32 %v150, 0.0
  %v155 = vpack.c.bf16 %v154, %v153
  %v156 = vld [vmem:[%s3] sm:$0xf]
  %v157 = vld [vmem:[%s3 + $0x4] sm:$0xf]
  %v158 = vld [vmem:[%s3 + $0x8] sm:$0xf]
  %v159 = vld [vmem:[%s3 + $0xc] sm:$0xf]
  %v160 = vld [vmem:[%s3 + $0x10] sm:$0xf]
  %v161 = vld [vmem:[%s3 + $0x14] sm:$0xf]
  %v162 = vld [vmem:[%s3 + $0x18] sm:$0xf]
  %v163 = vld [vmem:[%s3 + $0x1c] sm:$0xf]
  %v164 = vld [vmem:[%s3 + $0x20] sm:$0xf]
  %v165 = vld [vmem:[%s3 + $0x24] sm:$0xf]
  %v166 = vld [vmem:[%s3 + $0x28] sm:$0xf]
  %v167 = vld [vmem:[%s3 + $0x2c] sm:$0xf]
  %v168 = vld [vmem:[%s3 + $0x30] sm:$0xf]
  %v169 = vld [vmem:[%s3 + $0x34] sm:$0xf]
  %v170 = vld [vmem:[%s3 + $0x38] sm:$0xf]
  %v171 = vld [vmem:[%s3 + $0x3c] sm:$0xf]
  %v172 = vld [vmem:[%s4] sm:$0x1]
  %v174 = vlaneseq
  %v175 = vshrl.u32 %v174, 7
  %v176 = vsub.s32 0, %v175
  %v177 = vrot.slane %v172, %v176
  %v195 = vunpack.c.l.b16 %v156
  %v196 = vunpack.c.l.b16 %v157
  %v197 = vunpack.c.l.b16 %v158
  %v198 = vunpack.c.l.b16 %v159
  %v199 = vunpack.c.l.b16 %v160
  %v200 = vunpack.c.l.b16 %v161
  %v201 = vunpack.c.l.b16 %v162
  %v202 = vunpack.c.l.b16 %v163
  %v203 = vunpack.c.l.b16 %v164
  %v204 = vunpack.c.l.b16 %v165
  %v205 = vunpack.c.l.b16 %v166
  %v206 = vunpack.c.l.b16 %v167
  %v207 = vunpack.c.l.b16 %v168
  %v208 = vunpack.c.l.b16 %v169
  %v209 = vunpack.c.l.b16 %v170
  %v210 = vunpack.c.l.b16 %v171
  %v211 = vpack.c.b16 %v196, %v195
  %v212 = vpack.c.b16 %v198, %v197
  %v213 = vpack.c.b16 %v200, %v199
  %v214 = vpack.c.b16 %v202, %v201
  %v215 = vpack.c.b16 %v204, %v203
  %v216 = vpack.c.b16 %v206, %v205
  %v217 = vpack.c.b16 %v208, %v207
  %v218 = vpack.c.b16 %v210, %v209
  %227 = vmatprep.subr.bf16.mxu0 0
  %228 = vmatpush1.bf16.msra.mxu0 %v218
  %229 = vmatprep.subr.bf16.mxu0 0
  %230 = vmatpush1.bf16.msra.mxu0 %v217
  %231 = vmatprep.subr.bf16.mxu0 0
  %232 = vmatpush1.bf16.msra.mxu0 %v216
  %233 = vmatprep.subr.bf16.mxu0 0
  %234 = vmatpush1.bf16.msra.mxu0 %v215
  %235 = vmatprep.subr.bf16.mxu0 0
  %236 = vmatpush1.bf16.msra.mxu0 %v214
  %237 = vmatprep.subr.bf16.mxu0 0
  %238 = vmatpush1.bf16.msra.mxu0 %v213
  %239 = vmatprep.subr.bf16.mxu0 0
  %240 = vmatpush1.bf16.msra.mxu0 %v212
  %241 = vmatprep.subr.bf16.mxu0 0
  %242 = vmatpush1.bf16.msra.mxu0 %v211
  %243 = vmatprep.subr.bf16.mxu0 0
  %244 = vmatpush2.bf16.msra.mxu0 0
  %245 = vmatprep.subr.bf16.mxu0 0
  %246 = vmatpush2.bf16.msra.mxu0 0
  %247 = vmatprep.subr.bf16.mxu0 0
  %248 = vmatpush2.bf16.msra.mxu0 0
  %249 = vmatprep.subr.bf16.mxu0 0
  %250 = vmatpush2.bf16.msra.mxu0 0
  %251 = vmatprep.subr.bf16.mxu0 0
  %252 = vmatpush2.bf16.msra.mxu0 0
  %253 = vmatprep.subr.bf16.mxu0 0
  %254 = vmatpush2.bf16.msra.mxu0 0
  %255 = vmatprep.subr.bf16.mxu0 0
  %256 = vmatpush2.bf16.msra.mxu0 0
  %257 = vmatprep.subr.bf16.mxu0 0
  %258 = vmatpush2.bf16.msra.mxu0 0
  %259 = vmatprep.mubr.bf16.mxu0 0
  %260 = vmatmul.mubr.bf16.gmra.mxu0 %v155
  %v261 = vpop.f32.mrf.mxu0
  %v262 = vadd.f32 %v177, %v261
  %v263 = vpop.f32.mrf.mxu0
  %v264 = vpop.f32.mrf.mxu0
  %v265 = vadd.f32 %v177, %v264
  %v266 = vpop.f32.mrf.mxu0
  %267 = vdwg.mxu0
  %v268 = vpack.c.bf16 %v265, %v262
  %v269 = vld [vmem:[%s5] sm:$0xf]
  %v270 = vld [vmem:[%s5 + $0x4] sm:$0xf]
  %v271 = vld [vmem:[%s5 + $0x8] sm:$0xf]
  %v272 = vld [vmem:[%s5 + $0xc] sm:$0xf]
  %v273 = vld [vmem:[%s5 + $0x10] sm:$0xf]
  %v274 = vld [vmem:[%s5 + $0x14] sm:$0xf]
  %v275 = vld [vmem:[%s5 + $0x18] sm:$0xf]
  %v276 = vld [vmem:[%s5 + $0x1c] sm:$0xf]
  %v277 = vld [vmem:[%s5 + $0x20] sm:$0xf]
  %v278 = vld [vmem:[%s5 + $0x24] sm:$0xf]
  %v279 = vld [vmem:[%s5 + $0x28] sm:$0xf]
  %v280 = vld [vmem:[%s5 + $0x2c] sm:$0xf]
  %v281 = vld [vmem:[%s5 + $0x30] sm:$0xf]
  %v282 = vld [vmem:[%s5 + $0x34] sm:$0xf]
  %v283 = vld [vmem:[%s5 + $0x38] sm:$0xf]
  %v284 = vld [vmem:[%s5 + $0x3c] sm:$0xf]
  %v285 = vld [vmem:[%s6] sm:$0x1]
  %v287 = vlaneseq
  %v288 = vshrl.u32 %v287, 7
  %v289 = vsub.s32 0, %v288
  %v290 = vrot.slane %v285, %v289
  %v308 = vunpack.c.l.b16 %v269
  %v309 = vunpack.c.l.b16 %v270
  %v310 = vunpack.c.l.b16 %v271
  %v311 = vunpack.c.l.b16 %v272
  %v312 = vunpack.c.l.b16 %v273
  %v313 = vunpack.c.l.b16 %v274
  %v314 = vunpack.c.l.b16 %v275
  %v315 = vunpack.c.l.b16 %v276
  %v316 = vunpack.c.l.b16 %v277
  %v317 = vunpack.c.l.b16 %v278
  %v318 = vunpack.c.l.b16 %v279
  %v319 = vunpack.c.l.b16 %v280
  %v320 = vunpack.c.l.b16 %v281
  %v321 = vunpack.c.l.b16 %v282
  %v322 = vunpack.c.l.b16 %v283
  %v323 = vunpack.c.l.b16 %v284
  %v324 = vpack.c.b16 %v309, %v308
  %v325 = vpack.c.b16 %v311, %v310
  %v326 = vpack.c.b16 %v313, %v312
  %v327 = vpack.c.b16 %v315, %v314
  %v328 = vpack.c.b16 %v317, %v316
  %v329 = vpack.c.b16 %v319, %v318
  %v330 = vpack.c.b16 %v321, %v320
  %v331 = vpack.c.b16 %v323, %v322
  %340 = vmatprep.subr.bf16.mxu0 0
  %341 = vmatpush1.bf16.msra.mxu0 %v331
  %342 = vmatprep.subr.bf16.mxu0 0
  %343 = vmatpush1.bf16.msra.mxu0 %v330
  %344 = vmatprep.subr.bf16.mxu0 0
  %345 = vmatpush1.bf16.msra.mxu0 %v329
  %346 = vmatprep.subr.bf16.mxu0 0
  %347 = vmatpush1.bf16.msra.mxu0 %v328
  %348 = vmatprep.subr.bf16.mxu0 0
  %349 = vmatpush1.bf16.msra.mxu0 %v327
  %350 = vmatprep.subr.bf16.mxu0 0
  %351 = vmatpush1.bf16.msra.mxu0 %v326
  %352 = vmatprep.subr.bf16.mxu0 0
  %353 = vmatpush1.bf16.msra.mxu0 %v325
  %354 = vmatprep.subr.bf16.mxu0 0
  %355 = vmatpush1.bf16.msra.mxu0 %v324
  %356 = vmatprep.subr.bf16.mxu0 0
  %357 = vmatpush2.bf16.msra.mxu0 0
  %358 = vmatprep.subr.bf16.mxu0 0
  %359 = vmatpush2.bf16.msra.mxu0 0
  %360 = vmatprep.subr.bf16.mxu0 0
  %361 = vmatpush2.bf16.msra.mxu0 0
  %362 = vmatprep.subr.bf16.mxu0 0
  %363 = vmatpush2.bf16.msra.mxu0 0
  %364 = vmatprep.subr.bf16.mxu0 0
  %365 = vmatpush2.bf16.msra.mxu0 0
  %366 = vmatprep.subr.bf16.mxu0 0
  %367 = vmatpush2.bf16.msra.mxu0 0
  %368 = vmatprep.subr.bf16.mxu0 0
  %369 = vmatpush2.bf16.msra.mxu0 0
  %370 = vmatprep.subr.bf16.mxu0 0
  %371 = vmatpush2.bf16.msra.mxu0 0
  %372 = vmatprep.mubr.bf16.mxu0 0
  %373 = vmatmul.mubr.bf16.gmra.mxu0 %v268
  %v374 = vpop.f32.mrf.mxu0
  %v375 = vadd.f32 %v290, %v374
  %v376 = vpop.f32.mrf.mxu0
  %v377 = vpop.f32.mrf.mxu0
  %v378 = vadd.f32 %v290, %v377
  %v379 = vpop.f32.mrf.mxu0
  %380 = vdwg.mxu0
  %v381 = vmax.f32 %v375, 0.0
  %v382 = vmax.f32 %v378, 0.0
  %v383 = vpack.c.bf16 %v382, %v381
  %v384 = vld [vmem:[%s7] sm:$0xf]
  %v385 = vld [vmem:[%s7 + $0x4] sm:$0xf]
  %v386 = vld [vmem:[%s7 + $0x8] sm:$0xf]
  %v387 = vld [vmem:[%s7 + $0xc] sm:$0xf]
  %v388 = vld [vmem:[%s7 + $0x10] sm:$0xf]
  %v389 = vld [vmem:[%s7 + $0x14] sm:$0xf]
  %v390 = vld [vmem:[%s7 + $0x18] sm:$0xf]
  %v391 = vld [vmem:[%s7 + $0x1c] sm:$0xf]
  %v392 = vld [vmem:[%s7 + $0x20] sm:$0xf]
  %v393 = vld [vmem:[%s7 + $0x24] sm:$0xf]
  %v394 = vld [vmem:[%s7 + $0x28] sm:$0xf]
  %v395 = vld [vmem:[%s7 + $0x2c] sm:$0xf]
  %v396 = vld [vmem:[%s7 + $0x30] sm:$0xf]
  %v397 = vld [vmem:[%s7 + $0x34] sm:$0xf]
  %v398 = vld [vmem:[%s7 + $0x38] sm:$0xf]
  %v399 = vld [vmem:[%s7 + $0x3c] sm:$0xf]
  %v400 = vld [vmem:[%s8] sm:$0x1]
  %v402 = vlaneseq
  %v403 = vshrl.u32 %v402, 7
  %v404 = vsub.s32 0, %v403
  %v405 = vrot.slane %v400, %v404
  %v423 = vunpack.c.l.b16 %v384
  %v424 = vunpack.c.l.b16 %v385
  %v425 = vunpack.c.l.b16 %v386
  %v426 = vunpack.c.l.b16 %v387
  %v427 = vunpack.c.l.b16 %v388
  %v428 = vunpack.c.l.b16 %v389
  %v429 = vunpack.c.l.b16 %v390
  %v430 = vunpack.c.l.b16 %v391
  %v431 = vunpack.c.l.b16 %v392
  %v432 = vunpack.c.l.b16 %v393
  %v433 = vunpack.c.l.b16 %v394
  %v434 = vunpack.c.l.b16 %v395
  %v435 = vunpack.c.l.b16 %v396
  %v436 = vunpack.c.l.b16 %v397
  %v437 = vunpack.c.l.b16 %v398
  %v438 = vunpack.c.l.b16 %v399
  %v439 = vpack.c.b16 %v424, %v423
  %v440 = vpack.c.b16 %v426, %v425
  %v441 = vpack.c.b16 %v428, %v427
  %v442 = vpack.c.b16 %v430, %v429
  %v443 = vpack.c.b16 %v432, %v431
  %v444 = vpack.c.b16 %v434, %v433
  %v445 = vpack.c.b16 %v436, %v435
  %v446 = vpack.c.b16 %v438, %v437
  %455 = vmatprep.subr.bf16.mxu0 0
  %456 = vmatpush1.bf16.msra.mxu0 %v446
  %457 = vmatprep.subr.bf16.mxu0 0
  %458 = vmatpush1.bf16.msra.mxu0 %v445
  %459 = vmatprep.subr.bf16.mxu0 0
  %460 = vmatpush1.bf16.msra.mxu0 %v444
  %461 = vmatprep.subr.bf16.mxu0 0
  %462 = vmatpush1.bf16.msra.mxu0 %v443
  %463 = vmatprep.subr.bf16.mxu0 0
  %464 = vmatpush1.bf16.msra.mxu0 %v442
  %465 = vmatprep.subr.bf16.mxu0 0
  %466 = vmatpush1.bf16.msra.mxu0 %v441
  %467 = vmatprep.subr.bf16.mxu0 0
  %468 = vmatpush1.bf16.msra.mxu0 %v440
  %469 = vmatprep.subr.bf16.mxu0 0
  %470 = vmatpush1.bf16.msra.mxu0 %v439
  %471 = vmatprep.subr.bf16.mxu0 0
  %472 = vmatpush2.bf16.msra.mxu0 0
  %473 = vmatprep.subr.bf16.mxu0 0
  %474 = vmatpush2.bf16.msra.mxu0 0
  %475 = vmatprep.subr.bf16.mxu0 0
  %476 = vmatpush2.bf16.msra.mxu0 0
  %477 = vmatprep.subr.bf16.mxu0 0
  %478 = vmatpush2.bf16.msra.mxu0 0
  %479 = vmatprep.subr.bf16.mxu0 0
  %480 = vmatpush2.bf16.msra.mxu0 0
  %481 = vmatprep.subr.bf16.mxu0 0
  %482 = vmatpush2.bf16.msra.mxu0 0
  %483 = vmatprep.subr.bf16.mxu0 0
  %484 = vmatpush2.bf16.msra.mxu0 0
  %485 = vmatprep.subr.bf16.mxu0 0
  %486 = vmatpush2.bf16.msra.mxu0 0
  %487 = vmatprep.mubr.bf16.mxu0 0
  %488 = vmatmul.mubr.bf16.gmra.mxu0 %v383
  %v489 = vpop.f32.mrf.mxu0
  %v490 = vadd.f32 %v405, %v489
  %v491 = vpop.f32.mrf.mxu0
  %v492 = vpop.f32.mrf.mxu0
  %v493 = vadd.f32 %v405, %v492
  %v494 = vpop.f32.mrf.mxu0
  %495 = vdwg.mxu0
  %496 = vst [vmem:[%s9] sm:$0xff] %v490
  %497 = vst [vmem:[%s9 + $0x8] sm:$0xff] %v493
  // Predicated region
  $region38: #{_forward_impl.1} parent=0 // pred_check
    _
  $region39: #{_forward_impl.1} parent=0 // pred_check_branch
    %499 = sbr.rel (0) target = $region41
  $region40: #{_forward_impl.1} parent=0 // pred_region
    _
  $region41: #{_forward_impl.1} parent=0 // pred_fallthru
    _
  // Predicated region
  $region42: #{_forward_impl.1} parent=0 // pred_check
    _
  $region43: #{_forward_impl.1} parent=0 // pred_check_branch
    %501 = sbr.rel (0) target = $region45
  $region44: #{_forward_impl.1} parent=0 // pred_region
    _
  $region45: #{_forward_impl.1} parent=0 // pred_fallthru
    _

</llo_original>
